<compile_context>
chip_gen: v7x
topology: tpu7x:2x2x1
jax: 0.10.0
libtpu: 0.0.40
codegen_flags: <defaults>
</compile_context>

<pallas_src>
import jax
import jax.numpy as jnp
from jax.experimental import pallas as pl
from jax.experimental.pallas import tpu as pltpu

HIDDEN = 8  # fixed by the module: Linear(inDim, 8)


def _round_up(n, m):
    return (n + m - 1) // m * m


def _policy_mlp_kernel(x_ref, w1_ref, b1_ref, w2_ref, b2_ref, o_ref):
    # Batch-on-lanes layout: x_ref [inDim, TM], o_ref [outDim, TM].
    w1 = w1_ref[...].astype(jnp.float32)   # [HIDDEN, inDim]   (torch layout)
    b1 = b1_ref[...].astype(jnp.float32)   # [HIDDEN, 1]
    w2 = w2_ref[...].astype(jnp.float32)   # [outDim, HIDDEN]  (torch layout)
    b2 = b2_ref[...].astype(jnp.float32)   # [outDim, 1]

    in_dim = x_ref.shape[0]

    # Layer 1 (Linear(inDim, 8)) as unrolled VPU broadcast-FMAs:
    #   h[j, :] = b1[j] + sum_k w1[j, k] * x[k, :]
    # Per-row f32 upcast of x avoids materializing a full [inDim, TM] f32 copy.
    h = b1
    for k in range(in_dim):
        h = h + w1[:, k:k + 1] * x_ref[k:k + 1, :].astype(jnp.float32)
    h = jnp.maximum(h, 0.0)                 # ReLU, [HIDDEN, TM]

    # Layer 2 (Linear(8, outDim)) as unrolled VPU broadcast-FMAs.
    logits = b2
    for j in range(HIDDEN):
        logits = logits + w2[:, j:j + 1] * h[j:j + 1, :]   # [outDim, TM]

    # Softmax over the feature axis (axis 0 here == dim=1 of the torch layout).
    m = jnp.max(logits, axis=0, keepdims=True)
    e = jnp.exp(logits - m)
    denom = jnp.sum(e, axis=0, keepdims=True)
    # Exact EUP reciprocal: probabilities sum to 1 to f32 accuracy (safe for
    # downstream log-prob / sampling in policy-gradient code).
    o_ref[...] = (e * pl.reciprocal(denom, approx=False)).astype(o_ref.dtype)


def policy_mlp_lanes(x_t, w1, b1, w2, b2, *,
                     block_batch=128 * 1024, out_dtype=jnp.float32):
    """Lane-dense entry point (no wrapper transposes — use this in a pipeline).

    x_t: [inDim, B_pad] with B_pad a multiple of 128 (batch on the lane axis).
    Weights in PyTorch Linear layout: w1 [8, inDim], b1 [8], w2 [outDim, 8],
    b2 [outDim].  Returns [outDim, B_pad] probabilities (out_dtype).
    """
    in_dim, b_pad = x_t.shape
    out_dim, hidden = w2.shape
    assert hidden == HIDDEN and w1.shape == (HIDDEN, in_dim)
    assert b_pad % 128 == 0, "batch (lane) axis must be padded to 128"

    # Large batch tile (multiple of 128), clamped to the padded batch.  With
    # tm < b_pad the grid has >=2 steps so both v7x TensorCores get work.
    tm = min(_round_up(block_batch, 128), b_pad)
    grid = (pl.cdiv(b_pad, tm),)  # ragged last tile handled by Pallas

    b1c = b1.reshape(HIDDEN, 1)
    b2c = b2.reshape(out_dim, 1)

    return pl.pallas_call(
        _policy_mlp_kernel,
        out_shape=jax.ShapeDtypeStruct((out_dim, b_pad), out_dtype),
        grid_spec=pltpu.PrefetchScalarGridSpec(
            num_scalar_prefetch=0,
            grid=grid,
            in_specs=[
                pl.BlockSpec((in_dim, tm), lambda i: (0, i)),       # x (batch-tiled)
                pl.BlockSpec((HIDDEN, in_dim), lambda i: (0, 0)),   # w1 (resident)
                pl.BlockSpec((HIDDEN, 1), lambda i: (0, 0)),        # b1
                pl.BlockSpec((out_dim, HIDDEN), lambda i: (0, 0)),  # w2
                pl.BlockSpec((out_dim, 1), lambda i: (0, 0)),       # b2
            ],
            out_specs=pl.BlockSpec((out_dim, tm), lambda i: (0, i)),
        ),
        compiler_params=pltpu.CompilerParams(
            dimension_semantics=("parallel",),   # batch axis -> both TCs on v7x
            # Big tiles need more than v5e's 16 MiB default scoped VMEM; 32 MiB
            # also fits inside v7x's 64 MiB physical VMEM per core.
            vmem_limit_bytes=32 * 1024 * 1024,
        ),
    )(x_t, w1, b1c, w2, b2c)


def policy_mlp(x, w1, b1, w2, b2, *, block_batch=128 * 1024,
               out_dtype=jnp.float32):
    """PyTorch-layout convenience wrapper: x [B, inDim] -> probs [B, outDim].

    Note: the transpose/pad here and the final transpose are extra HBM passes;
    performance-critical callers should keep activations lane-dense and call
    policy_mlp_lanes directly.
    """
    batch, in_dim = x.shape
    out_dim = w2.shape[0]
    b_pad = _round_up(batch, 128)   # pad only to the lane granule, not to tm
    x_t = jnp.pad(jnp.transpose(x), ((0, 0), (0, b_pad - batch)))  # [inDim, b_pad]
    out_t = policy_mlp_lanes(x_t, w1, b1, w2, b2,
                             block_batch=block_batch, out_dtype=out_dtype)
    return jnp.transpose(out_t[:, :batch])   # [B, outDim]


def init_params(key, in_dim, out_dim):
    """PyTorch-style Linear init (torch weight layout): U(-1/sqrt(fan_in), +)."""
    k1, k2, k3, k4 = jax.random.split(key, 4)
    bound1 = 1.0 / jnp.sqrt(in_dim)
    bound2 = 1.0 / jnp.sqrt(HIDDEN)
    w1 = jax.random.uniform(k1, (HIDDEN, in_dim), jnp.float32, -bound1, bound1)
    b1 = jax.random.uniform(k2, (HIDDEN,), jnp.float32, -bound1, bound1)
    w2 = jax.random.uniform(k3, (out_dim, HIDDEN), jnp.float32, -bound2, bound2)
    b2 = jax.random.uniform(k4, (out_dim,), jnp.float32, -bound2, bound2)
    return w1, b1, w2, b2


def _reference(x, w1, b1, w2, b2):
    xf, w1f, b1f, w2f, b2f = (a.astype(jnp.float32) for a in (x, w1, b1, w2, b2))
    h = jnp.maximum(xf @ w1f.T + b1f, 0.0)
    return jax.nn.softmax(h @ w2f.T + b2f, axis=1)


if __name__ == "__main__":
    key = jax.random.PRNGKey(0)
    batch, in_dim, out_dim = 2, 4, 2  # small policy-gradient setup (e.g. CartPole)

    k_x, k_p, k_x2 = jax.random.split(key, 3)
    x = jax.random.normal(k_x, (batch, in_dim), jnp.float32)
    w1, b1, w2, b2 = init_params(k_p, in_dim, out_dim)

    # bf16 storage halves HBM traffic for the streamed x; math is f32 in-kernel
    # (required on v5e anyway — no bf16 VPU/EUP).
    x_bf = x.astype(jnp.bfloat16)
    w1_bf, b1_bf, w2_bf, b2_bf = (a.astype(jnp.bfloat16) for a in (w1, b1, w2, b2))

    out = policy_mlp(x_bf, w1_bf, b1_bf, w2_bf, b2_bf)
    out = jax.block_until_ready(out)

    ref = _reference(x_bf, w1_bf, b1_bf, w2_bf, b2_bf)
    assert out.shape == (batch, out_dim)
    assert jnp.allclose(out, ref, atol=2e-3, rtol=2e-3)
    assert jnp.allclose(jnp.sum(out, axis=1), 1.0, atol=1e-4)

    # Second check: ragged last tile (grid = cdiv) with a batch that is not a
    # multiple of the tile — exercises the no-overpadding path.
    batch2 = 300
    x2 = jax.random.normal(k_x2, (batch2, in_dim), jnp.float32).astype(jnp.bfloat16)
    out2 = policy_mlp(x2, w1_bf, b1_bf, w2_bf, b2_bf, block_batch=256)
    out2 = jax.block_until_ready(out2)
    ref2 = _reference(x2, w1_bf, b1_bf, w2_bf, b2_bf)
    assert out2.shape == (batch2, out_dim)
    assert jnp.allclose(out2, ref2, atol=2e-3, rtol=2e-3)
    assert jnp.allclose(jnp.sum(out2, axis=1), 1.0, atol=1e-4)

    print("KERNEL_OK")
</pallas_src>

<mosaic_0001>
module attributes {stable_mosaic.version = 11 : i64} {
  func.func @_policy_mlp_kernel(%arg0: i32, %arg1: memref<4x128xbf16, #tpu.memory_space<vmem>>, %arg2: memref<8x4xbf16, #tpu.memory_space<vmem>>, %arg3: memref<8x1xbf16, #tpu.memory_space<vmem>>, %arg4: memref<2x8xbf16, #tpu.memory_space<vmem>>, %arg5: memref<2x1xbf16, #tpu.memory_space<vmem>>, %arg6: memref<2x128xf32, #tpu.memory_space<vmem>>) attributes {dimension_semantics = [#tpu.dimension_semantics<parallel>], iteration_bounds = array<i64: 1>, scalar_prefetch = 0 : i64, scratch_operands = 0 : i64, tpu.core_type = #tpu.core_type<tc>, window_params = [{transform_indices = @transform_0, window_bounds = array<i64: 4, 128>}, {pipeline_mode = #tpu.pipeline_mode<synchronous>, transform_indices = @transform_1, window_bounds = array<i64: 8, 4>}, {pipeline_mode = #tpu.pipeline_mode<synchronous>, transform_indices = @transform_2, window_bounds = array<i64: 8, 1>}, {pipeline_mode = #tpu.pipeline_mode<synchronous>, transform_indices = @transform_3, window_bounds = array<i64: 2, 8>}, {pipeline_mode = #tpu.pipeline_mode<synchronous>, transform_indices = @transform_4, window_bounds = array<i64: 2, 1>}, {transform_indices = @transform_5, window_bounds = array<i64: 2, 128>}]} {
    %c0 = arith.constant 0 : index
    %c0_0 = arith.constant 0 : index
    %0 = vector.load %arg2[%c0, %c0_0] : memref<8x4xbf16, #tpu.memory_space<vmem>>, vector<8x4xbf16>
    %1 = arith.extf %0 : vector<8x4xbf16> to vector<8x4xf32>
    %c0_1 = arith.constant 0 : index
    %c0_2 = arith.constant 0 : index
    %2 = vector.load %arg3[%c0_1, %c0_2] : memref<8x1xbf16, #tpu.memory_space<vmem>>, vector<8x1xbf16>
    %3 = arith.extf %2 : vector<8x1xbf16> to vector<8x1xf32>
    %c0_3 = arith.constant 0 : index
    %c0_4 = arith.constant 0 : index
    %4 = vector.load %arg4[%c0_3, %c0_4] : memref<2x8xbf16, #tpu.memory_space<vmem>>, vector<2x8xbf16>
    %5 = arith.extf %4 : vector<2x8xbf16> to vector<2x8xf32>
    %c0_5 = arith.constant 0 : index
    %c0_6 = arith.constant 0 : index
    %6 = vector.load %arg5[%c0_5, %c0_6] : memref<2x1xbf16, #tpu.memory_space<vmem>>, vector<2x1xbf16>
    %7 = arith.extf %6 : vector<2x1xbf16> to vector<2x1xf32>
    %8 = vector.extract_strided_slice %1 {offsets = [0, 0], sizes = [8, 1], strides = [1, 1]} : vector<8x4xf32> to vector<8x1xf32>
    %c0_7 = arith.constant 0 : index
    %c0_8 = arith.constant 0 : index
    %9 = vector.load %arg1[%c0_7, %c0_8] : memref<4x128xbf16, #tpu.memory_space<vmem>>, vector<1x128xbf16>
    %10 = arith.extf %9 : vector<1x128xbf16> to vector<1x128xf32>
    %11 = vector.broadcast %8 : vector<8x1xf32> to vector<8x128xf32>
    %12 = vector.broadcast %10 : vector<1x128xf32> to vector<8x128xf32>
    %13 = arith.mulf %11, %12 : vector<8x128xf32>
    %14 = vector.broadcast %3 : vector<8x1xf32> to vector<8x128xf32>
    %15 = arith.addf %14, %13 : vector<8x128xf32>
    %16 = vector.extract_strided_slice %1 {offsets = [0, 1], sizes = [8, 1], strides = [1, 1]} : vector<8x4xf32> to vector<8x1xf32>
    %c1 = arith.constant 1 : index
    %c0_9 = arith.constant 0 : index
    %17 = vector.load %arg1[%c1, %c0_9] : memref<4x128xbf16, #tpu.memory_space<vmem>>, vector<1x128xbf16>
    %18 = arith.extf %17 : vector<1x128xbf16> to vector<1x128xf32>
    %19 = vector.broadcast %16 : vector<8x1xf32> to vector<8x128xf32>
    %20 = vector.broadcast %18 : vector<1x128xf32> to vector<8x128xf32>
    %21 = arith.mulf %19, %20 : vector<8x128xf32>
    %22 = arith.addf %15, %21 : vector<8x128xf32>
    %23 = vector.extract_strided_slice %1 {offsets = [0, 2], sizes = [8, 1], strides = [1, 1]} : vector<8x4xf32> to vector<8x1xf32>
    %c2 = arith.constant 2 : index
    %c0_10 = arith.constant 0 : index
    %24 = vector.load %arg1[%c2, %c0_10] : memref<4x128xbf16, #tpu.memory_space<vmem>>, vector<1x128xbf16>
    %25 = arith.extf %24 : vector<1x128xbf16> to vector<1x128xf32>
    %26 = vector.broadcast %23 : vector<8x1xf32> to vector<8x128xf32>
    %27 = vector.broadcast %25 : vector<1x128xf32> to vector<8x128xf32>
    %28 = arith.mulf %26, %27 : vector<8x128xf32>
    %29 = arith.addf %22, %28 : vector<8x128xf32>
    %30 = vector.extract_strided_slice %1 {offsets = [0, 3], sizes = [8, 1], strides = [1, 1]} : vector<8x4xf32> to vector<8x1xf32>
    %c3 = arith.constant 3 : index
    %c0_11 = arith.constant 0 : index
    %31 = vector.load %arg1[%c3, %c0_11] : memref<4x128xbf16, #tpu.memory_space<vmem>>, vector<1x128xbf16>
    %32 = arith.extf %31 : vector<1x128xbf16> to vector<1x128xf32>
    %33 = vector.broadcast %30 : vector<8x1xf32> to vector<8x128xf32>
    %34 = vector.broadcast %32 : vector<1x128xf32> to vector<8x128xf32>
    %35 = arith.mulf %33, %34 : vector<8x128xf32>
    %36 = arith.addf %29, %35 : vector<8x128xf32>
    %cst = arith.constant 0.000000e+00 : f32
    %37 = vector.broadcast %cst : f32 to vector<8x128xf32>
    %38 = arith.maximumf %36, %37 : vector<8x128xf32>
    %39 = vector.extract_strided_slice %5 {offsets = [0, 0], sizes = [2, 1], strides = [1, 1]} : vector<2x8xf32> to vector<2x1xf32>
    %40 = vector.extract_strided_slice %38 {offsets = [0, 0], sizes = [1, 128], strides = [1, 1]} : vector<8x128xf32> to vector<1x128xf32>
    %41 = vector.broadcast %39 : vector<2x1xf32> to vector<2x128xf32>
    %42 = vector.broadcast %40 : vector<1x128xf32> to vector<2x128xf32>
    %43 = arith.mulf %41, %42 : vector<2x128xf32>
    %44 = vector.broadcast %7 : vector<2x1xf32> to vector<2x128xf32>
    %45 = arith.addf %44, %43 : vector<2x128xf32>
    %46 = vector.extract_strided_slice %5 {offsets = [0, 1], sizes = [2, 1], strides = [1, 1]} : vector<2x8xf32> to vector<2x1xf32>
    %47 = vector.extract_strided_slice %38 {offsets = [1, 0], sizes = [1, 128], strides = [1, 1]} : vector<8x128xf32> to vector<1x128xf32>
    %48 = vector.broadcast %46 : vector<2x1xf32> to vector<2x128xf32>
    %49 = vector.broadcast %47 : vector<1x128xf32> to vector<2x128xf32>
    %50 = arith.mulf %48, %49 : vector<2x128xf32>
    %51 = arith.addf %45, %50 : vector<2x128xf32>
    %52 = vector.extract_strided_slice %5 {offsets = [0, 2], sizes = [2, 1], strides = [1, 1]} : vector<2x8xf32> to vector<2x1xf32>
    %53 = vector.extract_strided_slice %38 {offsets = [2, 0], sizes = [1, 128], strides = [1, 1]} : vector<8x128xf32> to vector<1x128xf32>
    %54 = vector.broadcast %52 : vector<2x1xf32> to vector<2x128xf32>
    %55 = vector.broadcast %53 : vector<1x128xf32> to vector<2x128xf32>
    %56 = arith.mulf %54, %55 : vector<2x128xf32>
    %57 = arith.addf %51, %56 : vector<2x128xf32>
    %58 = vector.extract_strided_slice %5 {offsets = [0, 3], sizes = [2, 1], strides = [1, 1]} : vector<2x8xf32> to vector<2x1xf32>
    %59 = vector.extract_strided_slice %38 {offsets = [3, 0], sizes = [1, 128], strides = [1, 1]} : vector<8x128xf32> to vector<1x128xf32>
    %60 = vector.broadcast %58 : vector<2x1xf32> to vector<2x128xf32>
    %61 = vector.broadcast %59 : vector<1x128xf32> to vector<2x128xf32>
    %62 = arith.mulf %60, %61 : vector<2x128xf32>
    %63 = arith.addf %57, %62 : vector<2x128xf32>
    %64 = vector.extract_strided_slice %5 {offsets = [0, 4], sizes = [2, 1], strides = [1, 1]} : vector<2x8xf32> to vector<2x1xf32>
    %65 = vector.extract_strided_slice %38 {offsets = [4, 0], sizes = [1, 128], strides = [1, 1]} : vector<8x128xf32> to vector<1x128xf32>
    %66 = vector.broadcast %64 : vector<2x1xf32> to vector<2x128xf32>
    %67 = vector.broadcast %65 : vector<1x128xf32> to vector<2x128xf32>
    %68 = arith.mulf %66, %67 : vector<2x128xf32>
    %69 = arith.addf %63, %68 : vector<2x128xf32>
    %70 = vector.extract_strided_slice %5 {offsets = [0, 5], sizes = [2, 1], strides = [1, 1]} : vector<2x8xf32> to vector<2x1xf32>
    %71 = vector.extract_strided_slice %38 {offsets = [5, 0], sizes = [1, 128], strides = [1, 1]} : vector<8x128xf32> to vector<1x128xf32>
    %72 = vector.broadcast %70 : vector<2x1xf32> to vector<2x128xf32>
    %73 = vector.broadcast %71 : vector<1x128xf32> to vector<2x128xf32>
    %74 = arith.mulf %72, %73 : vector<2x128xf32>
    %75 = arith.addf %69, %74 : vector<2x128xf32>
    %76 = vector.extract_strided_slice %5 {offsets = [0, 6], sizes = [2, 1], strides = [1, 1]} : vector<2x8xf32> to vector<2x1xf32>
    %77 = vector.extract_strided_slice %38 {offsets = [6, 0], sizes = [1, 128], strides = [1, 1]} : vector<8x128xf32> to vector<1x128xf32>
    %78 = vector.broadcast %76 : vector<2x1xf32> to vector<2x128xf32>
    %79 = vector.broadcast %77 : vector<1x128xf32> to vector<2x128xf32>
    %80 = arith.mulf %78, %79 : vector<2x128xf32>
    %81 = arith.addf %75, %80 : vector<2x128xf32>
    %82 = vector.extract_strided_slice %5 {offsets = [0, 7], sizes = [2, 1], strides = [1, 1]} : vector<2x8xf32> to vector<2x1xf32>
    %83 = vector.extract_strided_slice %38 {offsets = [7, 0], sizes = [1, 128], strides = [1, 1]} : vector<8x128xf32> to vector<1x128xf32>
    %84 = vector.broadcast %82 : vector<2x1xf32> to vector<2x128xf32>
    %85 = vector.broadcast %83 : vector<1x128xf32> to vector<2x128xf32>
    %86 = arith.mulf %84, %85 : vector<2x128xf32>
    %87 = arith.addf %81, %86 : vector<2x128xf32>
    %cst_12 = arith.constant dense<0xFF800000> : vector<128xf32>
    %88 = vector.multi_reduction <maximumf>, %87, %cst_12 [0] : vector<2x128xf32> to vector<128xf32>
    %89 = vector.shape_cast %88 : vector<128xf32> to vector<1x128xf32>
    %90 = vector.broadcast %89 : vector<1x128xf32> to vector<2x128xf32>
    %91 = arith.subf %87, %90 : vector<2x128xf32>
    %92 = math.exp %91 : vector<2x128xf32>
    %cst_13 = arith.constant dense<0.000000e+00> : vector<128xf32>
    %93 = vector.multi_reduction <add>, %92, %cst_13 [0] : vector<2x128xf32> to vector<128xf32>
    %94 = vector.shape_cast %93 : vector<128xf32> to vector<1x128xf32>
    %95 = tpu.reciprocal %94 : vector<1x128xf32> -> vector<1x128xf32>
    %96 = vector.broadcast %95 : vector<1x128xf32> to vector<2x128xf32>
    %97 = arith.mulf %92, %96 : vector<2x128xf32>
    %c0_14 = arith.constant 0 : index
    %c0_15 = arith.constant 0 : index
    %98 = vector.load %arg6[%c0_14, %c0_15] : memref<2x128xf32, #tpu.memory_space<vmem>>, vector<2x128xf32>
    tpu.vector_store %arg6[%c0_14, %c0_15], %97 {strides = array<i32>} : memref<2x128xf32, #tpu.memory_space<vmem>>, vector<2x128xf32>,
    return
  }
  func.func @transform_0(%arg0: i32) -> (i32, i32) {
    %c0_i32 = arith.constant 0 : i32
    %c0_i32_0 = arith.constant 0 : i32
    return %c0_i32, %arg0 : i32, i32
  }
  func.func @transform_1(%arg0: i32) -> (i32, i32) {
    %c0_i32 = arith.constant 0 : i32
    %c0_i32_0 = arith.constant 0 : i32
    %c0_i32_1 = arith.constant 0 : i32
    return %c0_i32, %c0_i32_0 : i32, i32
  }
  func.func @transform_2(%arg0: i32) -> (i32, i32) {
    %c0_i32 = arith.constant 0 : i32
    %c0_i32_0 = arith.constant 0 : i32
    %c0_i32_1 = arith.constant 0 : i32
    return %c0_i32, %c0_i32_0 : i32, i32
  }
  func.func @transform_3(%arg0: i32) -> (i32, i32) {
    %c0_i32 = arith.constant 0 : i32
    %c0_i32_0 = arith.constant 0 : i32
    %c0_i32_1 = arith.constant 0 : i32
    return %c0_i32, %c0_i32_0 : i32, i32
  }
  func.func @transform_4(%arg0: i32) -> (i32, i32) {
    %c0_i32 = arith.constant 0 : i32
    %c0_i32_0 = arith.constant 0 : i32
    %c0_i32_1 = arith.constant 0 : i32
    return %c0_i32, %c0_i32_0 : i32, i32
  }
  func.func @transform_5(%arg0: i32) -> (i32, i32) {
    %c0_i32 = arith.constant 0 : i32
    %c0_i32_0 = arith.constant 0 : i32
    return %c0_i32, %arg0 : i32, i32
  }
}

</mosaic_0001>

<llo_original>
// kernel: tpu_custom_call.1
$region0: #{tpu_custom_call.1}
  #allocation0 [shape = 'u32[]', space=smem, size = 0x4, offset = 0x4, fixed_abs, tag = 'smem constant byte address 0x4 - core index']
  #allocation1 [shape = 'u32[144,128]{1,0:T(1,128)}', space=vmem, size = 0x12000, scoped, tag = 'internal scratch']
  %s0 = inlined_call_operand.vmem [shape: bf16[4,128], index: 0, kind: input, shape index: {}]
  %s1 = inlined_call_operand.vmem [shape: bf16[8,4], index: 1, kind: input, shape index: {}]
  %s2 = inlined_call_operand.vmem [shape: bf16[8,1], index: 2, kind: input, shape index: {}]
  %s3 = inlined_call_operand.vmem [shape: bf16[2,8], index: 3, kind: input, shape index: {}]
  %s4 = inlined_call_operand.vmem [shape: bf16[2,1], index: 4, kind: input, shape index: {}]
  %s5 = inlined_call_operand.hbm [shape: f32[2,128], index: 5, kind: output, shape index: {}]
  %s6 = sld [smem:[#allocation0]]
  $region30: #{tpu_custom_call.1} parent=0
    _
  %s8 = ssub.s32 1, %s6
  %s9 = scalar_select 0, %s8, %s6
  $region1: #{tpu_custom_call.1} parent=0
    #allocation2 [shape = 'u8[1024]{0}', space=vmem, size = 0x400, scoped, tag = 'output window, operand 0, single buffered']
    #allocation3 [shape = 's32[1]{0}', space=sflag, size = 0x4, scoped, tag = 'scoped memory for tpu_custom_call.1']
    %10 = vsyncpa [#allocation3], 0
    // Predicated region
    $region2: #{tpu_custom_call.1} parent=1 // pred_check
      _
    $region3: #{tpu_custom_call.1} parent=1 // pred_check_branch
      %12 = sbr.rel (0) target = $region5
    $region4: #{tpu_custom_call.1} parent=1 // pred_region
      _
    $region5: #{tpu_custom_call.1} parent=1 // pred_fallthru
      _
    // Predicated region
    $region6: #{tpu_custom_call.1} parent=1 // pred_check
      _
    $region7: #{tpu_custom_call.1} parent=1 // pred_check_branch
      %14 = sbr.rel (0) target = $region9
    $region8: #{tpu_custom_call.1} parent=1 // pred_region
      _
    $region9: #{tpu_custom_call.1} parent=1 // pred_fallthru
      _
    // Predicated region
    $region10: #{tpu_custom_call.1} parent=1 // pred_check
      _
    $region11: #{tpu_custom_call.1} parent=1 // pred_check_branch
      %16 = sbr.rel (0) target = $region13
    $region12: #{tpu_custom_call.1} parent=1 // pred_region
      _
    $region13: #{tpu_custom_call.1} parent=1 // pred_fallthru
      _
    // Predicated region
    $region14: #{tpu_custom_call.1} parent=1 // pred_check
      _
    $region15: #{tpu_custom_call.1} parent=1 // pred_check_branch
      %18 = sbr.rel (0) target = $region17
    $region16: #{tpu_custom_call.1} parent=1 // pred_region
      _
    $region17: #{tpu_custom_call.1} parent=1 // pred_fallthru
      _
    // Predicated region
    $region18: #{tpu_custom_call.1} parent=1 // pred_check
      _
    $region19: #{tpu_custom_call.1} parent=1 // pred_check_branch
      %20 = sbr.rel (0) target = $region21
    $region20: #{tpu_custom_call.1} parent=1 // pred_region
      _
    $region21: #{tpu_custom_call.1} parent=1 // pred_fallthru
      _
    %v21 = vld [vmem:[%s1] sm:$0xf]
    %v22 = vunpack.c.l.bf16 %v21
    %v23 = vld [vmem:[%s2] sm:$0xf]
    %v24 = vunpack.c.l.bf16 %v23
    %v25 = vld [vmem:[%s3] sm:$0x1]
    %v26 = vunpack.c.l.bf16 %v25
    %v27 = vld [vmem:[%s4] sm:$0x1]
    %v28 = vunpack.c.l.bf16 %v27
    %v29 = vld [vmem:[%s0] sm:$0x1]
    %v30 = vunpack.c.l.bf16 %v29
    %32 = vset.pattern.permute.xlu0 0
    %33 = vperm.xlu0 %32, %v22
    %v34 = vpop.permute.xlu0 %33
    %v36 = vlaneseq
    %v37 = vshrl.u32 %v36, 7
    %v38 = vsub.s32 0, %v37
    %v39 = vrot.slane %v30, %v38
    %v40 = vmul.f32 %v34, %v39
    %42 = vset.pattern.permute.xlu0 0
    %43 = vperm.xlu0 %42, %v24
    %v44 = vpop.permute.xlu0 %43
    %v46 = vadd.f32 %v44, %v40
    %47 = vset.pattern.permute.xlu0 1
    %48 = vperm.xlu0 %47, %v22
    %v49 = vpop.permute.xlu0 %48
    %v51 = vlaneseq
    %v52 = vshrl.u32 %v51, 7
    %v53 = vsub.s32 1, %v52
    %v54 = vrot.slane %v30, %v53
    %v55 = vmul.f32 %v49, %v54
    %v56 = vadd.f32 %v46, %v55
    %v57 = vld [vmem:[%s0] sm:$0x2]
    %v58 = vunpack.c.l.bf16 %v57
    %59 = vset.pattern.permute.xlu0 2
    %60 = vperm.xlu0 %59, %v22
    %v61 = vpop.permute.xlu0 %60
    %v63 = vlaneseq
    %v64 = vshrl.u32 %v63, 7
    %v65 = vsub.s32 2, %v64
    %v66 = vrot.slane %v58, %v65
    %v67 = vmul.f32 %v61, %v66
    %v68 = vadd.f32 %v56, %v67
    %69 = vset.pattern.permute.xlu0 3
    %70 = vperm.xlu0 %69, %v22
    %v71 = vpop.permute.xlu0 %70
    %v73 = vlaneseq
    %v74 = vshrl.u32 %v73, 7
    %v75 = vsub.s32 3, %v74
    %v76 = vrot.slane %v58, %v75
    %v77 = vmul.f32 %v71, %v76
    %v78 = vadd.f32 %v68, %v77
    %v79 = vmax.f32 %v78, 0.0
    %81 = vset.pattern.permute.xlu0 0
    %82 = vperm.xlu0 %81, %v26
    %v83 = vpop.permute.xlu0 %82
    %v86 = vunpack.c.l.s4 269488144
    %v87 = vunpack.c.0.s8 %v86
    %v88 = vlaneseq
    %v89 = vshrl.u32 %v88, 7
    %v90 = vsub.s32 %v87, %v89
    %v91 = vrot.slane %v83, %v90
    %v92 = vlaneseq
    %v93 = vshrl.u32 %v92, 7
    %v94 = vsub.s32 0, %v93
    %v95 = vrot.slane %v79, %v94
    %v96 = vmul.f32 %v91, %v95
    %98 = vset.pattern.permute.xlu0 0
    %99 = vperm.xlu0 %98, %v28
    %v100 = vpop.permute.xlu0 %99
    %v103 = vunpack.c.l.s4 269488144
    %v104 = vunpack.c.0.s8 %v103
    %v105 = vlaneseq
    %v106 = vshrl.u32 %v105, 7
    %v107 = vsub.s32 %v104, %v106
    %v108 = vrot.slane %v100, %v107
    %v109 = vadd.f32 %v108, %v96
    %110 = vset.pattern.permute.xlu0 1
    %111 = vperm.xlu0 %110, %v26
    %v112 = vpop.permute.xlu0 %111
    %v115 = vunpack.c.l.s4 269488144
    %v116 = vunpack.c.0.s8 %v115
    %v117 = vlaneseq
    %v118 = vshrl.u32 %v117, 7
    %v119 = vsub.s32 %v116, %v118
    %v120 = vrot.slane %v112, %v119
    %v121 = vlaneseq
    %v122 = vshrl.u32 %v121, 7
    %v123 = vsub.s32 1, %v122
    %v124 = vrot.slane %v79, %v123
    %v125 = vmul.f32 %v120, %v124
    %v126 = vadd.f32 %v109, %v125
    %127 = vset.pattern.permute.xlu0 2
    %128 = vperm.xlu0 %127, %v26
    %v129 = vpop.permute.xlu0 %128
    %v132 = vunpack.c.l.s4 269488144
    %v133 = vunpack.c.0.s8 %v132
    %v134 = vlaneseq
    %v135 = vshrl.u32 %v134, 7
    %v136 = vsub.s32 %v133, %v135
    %v137 = vrot.slane %v129, %v136
    %v138 = vlaneseq
    %v139 = vshrl.u32 %v138, 7
    %v140 = vsub.s32 2, %v139
    %v141 = vrot.slane %v79, %v140
    %v142 = vmul.f32 %v137, %v141
    %v143 = vadd.f32 %v126, %v142
    %144 = vset.pattern.permute.xlu0 3
    %145 = vperm.xlu0 %144, %v26
    %v146 = vpop.permute.xlu0 %145
    %v149 = vunpack.c.l.s4 269488144
    %v150 = vunpack.c.0.s8 %v149
    %v151 = vlaneseq
    %v152 = vshrl.u32 %v151, 7
    %v153 = vsub.s32 %v150, %v152
    %v154 = vrot.slane %v146, %v153
    %v155 = vlaneseq
    %v156 = vshrl.u32 %v155, 7
    %v157 = vsub.s32 3, %v156
    %v158 = vrot.slane %v79, %v157
    %v159 = vmul.f32 %v154, %v158
    %v160 = vadd.f32 %v143, %v159
    %161 = vset.pattern.permute.xlu0 4
    %162 = vperm.xlu0 %161, %v26
    %v163 = vpop.permute.xlu0 %162
    %v166 = vunpack.c.l.s4 269488144
    %v167 = vunpack.c.0.s8 %v166
    %v168 = vlaneseq
    %v169 = vshrl.u32 %v168, 7
    %v170 = vsub.s32 %v167, %v169
    %v171 = vrot.slane %v163, %v170
    %v172 = vlaneseq
    %v173 = vshrl.u32 %v172, 7
    %v174 = vsub.s32 4, %v173
    %v175 = vrot.slane %v79, %v174
    %v176 = vmul.f32 %v171, %v175
    %v177 = vadd.f32 %v160, %v176
    %178 = vset.pattern.permute.xlu0 5
    %179 = vperm.xlu0 %178, %v26
    %v180 = vpop.permute.xlu0 %179
    %v183 = vunpack.c.l.s4 269488144
    %v184 = vunpack.c.0.s8 %v183
    %v185 = vlaneseq
    %v186 = vshrl.u32 %v185, 7
    %v187 = vsub.s32 %v184, %v186
    %v188 = vrot.slane %v180, %v187
    %v189 = vlaneseq
    %v190 = vshrl.u32 %v189, 7
    %v191 = vsub.s32 5, %v190
    %v192 = vrot.slane %v79, %v191
    %v193 = vmul.f32 %v188, %v192
    %v194 = vadd.f32 %v177, %v193
    %195 = vset.pattern.permute.xlu0 6
    %196 = vperm.xlu0 %195, %v26
    %v197 = vpop.permute.xlu0 %196
    %v200 = vunpack.c.l.s4 269488144
    %v201 = vunpack.c.0.s8 %v200
    %v202 = vlaneseq
    %v203 = vshrl.u32 %v202, 7
    %v204 = vsub.s32 %v201, %v203
    %v205 = vrot.slane %v197, %v204
    %v206 = vlaneseq
    %v207 = vshrl.u32 %v206, 7
    %v208 = vsub.s32 6, %v207
    %v209 = vrot.slane %v79, %v208
    %v210 = vmul.f32 %v205, %v209
    %v211 = vadd.f32 %v194, %v210
    %212 = vset.pattern.permute.xlu0 7
    %213 = vperm.xlu0 %212, %v26
    %v214 = vpop.permute.xlu0 %213
    %v217 = vunpack.c.l.s4 269488144
    %v218 = vunpack.c.0.s8 %v217
    %v219 = vlaneseq
    %v220 = vshrl.u32 %v219, 7
    %v221 = vsub.s32 %v218, %v220
    %v222 = vrot.slane %v214, %v221
    %v223 = vlaneseq
    %v224 = vshrl.u32 %v223, 7
    %v225 = vsub.s32 7, %v224
    %v226 = vrot.slane %v79, %v225
    %v227 = vmul.f32 %v222, %v226
    %v228 = vadd.f32 %v211, %v227
    %vm229 = vcmask 1041408
    %v230 = vsel %vm229, %v228, -inf
    %v231 = vrot.slane %v230, 4
    %v232 = vmax.f32 %v230, %v231
    %v233 = vrot.slane %v232, 2
    %v234 = vmax.f32 %v232, %v233
    %v235 = vrot.slane %v234, 1
    %v236 = vmax.f32 %v234, %v235
    %v237 = vsub.f32 %v228, %v236
    %v238 = vmul.f32 %v237, 1.442695
    %v239 = vpow.pop %v238
    %v240 = vsel %vm229, %v239, 0.0
    %v241 = vrot.slane %v240, 4
    %v242 = vadd.f32 %v240, %v241
    %v243 = vrot.slane %v242, 2
    %v244 = vadd.f32 %v242, %v243
    %v245 = vrot.slane %v244, 1
    %v246 = vadd.f32 %v244, %v245
    %v247 = vrcp.pop %v246
    %v248 = vmul.f32 %v239, %v247
    %249 = vst [vmem:[#allocation2] sm:$0x3] %v248
    // Predicated region
    $region22: #{tpu_custom_call.1} parent=1 // pred_check
      _
    $region23: #{tpu_custom_call.1} parent=1 // pred_check_branch
      %251 = sbr.rel (0) target = $region25
    $region24: #{tpu_custom_call.1} parent=1 // pred_region
      %s253 = ssub.s32 32, 32
      %254 = vsyncadd [#allocation3], %s253
      %s256 = sshll.u32 [#allocation2], 4
      %s257 = int_to_ptr.vmem [resolvable:$true] %s256
      %259 = dma.vmem_to_hbm [thread:$0]  %s257, 32, %s5, [#allocation3]
    $region25: #{tpu_custom_call.1} parent=1 // pred_fallthru
      _
    // Predicated region
    $region26: #{tpu_custom_call.1} parent=1 // pred_check
      _
    $region27: #{tpu_custom_call.1} parent=1 // pred_check_branch
      %261 = sbr.rel (0) target = $region29
    $region28: #{tpu_custom_call.1} parent=1 // pred_region
      %262 = dma.done [#allocation3], 32
    $region29: #{tpu_custom_call.1} parent=1 // pred_fallthru
      _
    %263 = vsyncpa [#allocation3], 1

</llo_original>
